<compile_context>
chip_gen: v5e
topology: v5e:2x2
jax: 0.10.0
libtpu: 0.0.40
codegen_flags: <defaults>
</compile_context>

<pallas_src>
import math

import jax
import jax.numpy as jnp
from jax import lax
from jax.experimental import pallas as pl
from jax.experimental.pallas import tpu as pltpu


def _attn_kernel(x_ref, w_ref, b_ref, o_ref):
    # x_ref: (bt, S, E)       input block (Q = K = V = x)
    # w_ref: (E, Ap)          out-projection weight, pre-transposed, lane-padded to Ap
    # b_ref: (1, Ap)          out-projection bias, lane-padded
    # o_ref: (bt, S, out_w)   output block (out_w == A for the unpadded path)
    x = x_ref[...]
    bt, seq, embed_dim = x.shape
    out_width = o_ref.shape[-1]

    # bf16 MXU operands (f32 accumulation) when the input is f32.
    compute_dtype = jnp.bfloat16 if x.dtype == jnp.float32 else x.dtype

    # Fold 1/sqrt(E) into the Q operand (S*E mults instead of scaling the (S, S) scores).
    scale = jnp.asarray(1.0 / math.sqrt(embed_dim), dtype=x.dtype)
    q = (x * scale).astype(compute_dtype)
    xc = x.astype(compute_dtype)

    # scores[b, i, j] = sum_e q[b, i, e] * x[b, j, e]  -- transpose folded into the MXU feed.
    scores = lax.dot_general(
        q, xc,
        dimension_numbers=(((2,), (2,)), ((0,), (0,))),
        preferred_element_type=jnp.float32)                        # (bt, S, S) f32

    # Numerically stable softmax numerator; normalization deferred past the PV matmul.
    scores = scores - jnp.max(scores, axis=-1, keepdims=True)
    p = jnp.exp(scores)                                            # unnormalized, f32
    denom = jnp.sum(p, axis=-1, keepdims=True)                     # (bt, S, 1) f32

    # Re-associated projection: xw = x @ W as one 2-D matmul (amortizes MXU push/drain).
    xw = lax.dot_general(
        xc.reshape(bt * seq, embed_dim), w_ref[...].astype(compute_dtype),
        dimension_numbers=(((1,), (0,)), ((), ())),
        preferred_element_type=jnp.float32)                        # (bt*S, Ap) f32
    xw = xw.reshape(bt, seq, -1).astype(compute_dtype)

    out_un = lax.dot_general(
        p.astype(compute_dtype), xw,
        dimension_numbers=(((2,), (1,)), ((0,), (0,))),
        preferred_element_type=jnp.float32)                        # (bt, S, Ap) f32

    # Deferred normalization on the small output tile + bias; exact reciprocal.
    out = out_un * (1.0 / denom) + b_ref[...].astype(jnp.float32)[None]
    o_ref[...] = out[..., :out_width].astype(o_ref.dtype)


def _round_up(n, m):
    return ((n + m - 1) // m) * m


def _tpu_config():
    """Best-effort (vmem_budget_bytes, physical_vmem_bytes, num_tensorcores)."""
    kind = ""
    try:
        kind = jax.devices()[0].device_kind.lower()
    except Exception:
        pass
    if "v7" in kind:
        # 64 MiB physical VMEM per TensorCore, 2 TensorCores per chip.
        return 44 * 1024 * 1024, 64 * 1024 * 1024, 2
    if "v6" in kind or "v5e" in kind or "v5 lite" in kind or "v5litepod" in kind:
        # 128 MiB physical VMEM, 1 TensorCore.
        return 80 * 1024 * 1024, 128 * 1024 * 1024, 1
    # Unknown generation: conservative defaults.
    return 32 * 1024 * 1024, 64 * 1024 * 1024, 1


def _per_batch_vmem_bytes(S, E, Ap, out_width, in_itemsize, out_itemsize, cdt_itemsize):
    """Approximate per-batch-element VMEM footprint of one grid step (conservative)."""
    b = 0
    b += 2 * S * E * in_itemsize            # x block (double-buffered)
    b += 2 * S * out_width * out_itemsize   # output block (double-buffered)
    b += 2 * S * S * 4                      # scores + unnormalized p (f32)
    b += S * S * cdt_itemsize               # p cast fed to the PV matmul
    b += 2 * S * E * cdt_itemsize           # q / x casts
    b += S * Ap * (4 + cdt_itemsize)        # xw (f32 accumulator + cast)
    b += 2 * S * Ap * 4                     # out_un / out (f32)
    return b


def _pick_batch_block(batch, per_batch_bytes, fixed_bytes, vmem_budget, num_cores):
    """Largest divisor of batch that fits the VMEM budget; on dual-TC chips keep the grid
    long enough (>= 2 pipelined steps per core) when the batch allows it."""
    divisors = [d for d in range(1, batch + 1) if batch % d == 0]
    fitting = [d for d in divisors if fixed_bytes + d * per_batch_bytes <= vmem_budget]
    bt = max(fitting) if fitting else 1
    if num_cores >= 2:
        min_steps = min(batch, 2 * num_cores)
        cands = [d for d in fitting if batch // d >= min_steps]
        if not cands:
            cands = [d for d in divisors if batch // d >= min_steps]
        if cands:
            bt = max(cands)
    return max(bt, 1)


def _forward(x, w_t, b2, attn_dim, *, batch_block=None):
    B, S, E = x.shape
    Ap = w_t.shape[1]
    A = attn_dim

    # Unpadded output for small A (the common attn_dim=2 case); lane-dense padded output
    # (sliced back in the wrapper) only when A is wide enough to be worth it.
    use_padded_out = A >= 64
    out_width = Ap if use_padded_out else A

    vmem_budget, physical_vmem, num_cores = _tpu_config()
    in_itemsize = jnp.dtype(x.dtype).itemsize
    cdt_itemsize = 2 if x.dtype == jnp.float32 else in_itemsize
    per_b = _per_batch_vmem_bytes(S, E, Ap, out_width, in_itemsize, in_itemsize,
                                  cdt_itemsize)
    fixed = 2 * (w_t.size * jnp.dtype(w_t.dtype).itemsize
                 + b2.size * jnp.dtype(b2.dtype).itemsize) + (1 << 20)

    if batch_block is None:
        bt = _pick_batch_block(B, per_b, fixed, vmem_budget, num_cores)
    else:
        bt = batch_block
    assert B % bt == 0, "batch_block must divide batch"

    needed = fixed + bt * per_b
    vmem_limit = int(min(physical_vmem, max(vmem_budget, needed + (4 << 20))))

    out = pl.pallas_call(
        _attn_kernel,
        out_shape=jax.ShapeDtypeStruct((B, S, out_width), x.dtype),
        grid_spec=pltpu.PrefetchScalarGridSpec(
            num_scalar_prefetch=0,
            grid=(B // bt,),
            in_specs=[
                pl.BlockSpec((bt, S, E), lambda b: (b, 0, 0)),   # x: bt batches / step
                pl.BlockSpec((E, Ap), lambda b: (0, 0)),         # padded weight (full)
                pl.BlockSpec((1, Ap), lambda b: (0, 0)),         # padded bias (full)
            ],
            out_specs=pl.BlockSpec((bt, S, out_width), lambda b: (b, 0, 0)),
        ),
        compiler_params=pltpu.CompilerParams(
            dimension_semantics=("parallel",),
            vmem_limit_bytes=vmem_limit,
        ),
    )(x, w_t, b2)

    if use_padded_out and out_width != A:
        out = out[..., :A]
    return out


def make_router_pf_self_attention(w_out, b_out, *, batch_block=None):
    """Factory: hoists the weight transpose / lane-pad out of the per-call path.

    w_out: (A, E) torch nn.Linear weight layout; b_out: (A,).
    Returns forward(x) with x: (B, S, E) -> (B, S, A).
    """
    A, E = w_out.shape
    Ap = max(128, _round_up(A, 128))
    w_t = jnp.zeros((E, Ap), dtype=w_out.dtype).at[:, :A].set(w_out.T)
    b2 = jnp.zeros((1, Ap), dtype=b_out.dtype).at[:, :A].set(b_out)

    def forward(x):
        return _forward(x, w_t, b2, A, batch_block=batch_block)

    return forward


def router_pf_self_attention(x, w_out, b_out, *, batch_block=None):
    """Convenience single-call wrapper (parameter prep constant-folds under jit)."""
    return make_router_pf_self_attention(w_out, b_out, batch_block=batch_block)(x)


def _reference(x, w_out, b_out):
    # Pure-JAX reference matching the PyTorch forward.
    E = x.shape[-1]
    scores = jnp.einsum("bqe,bke->bqk", x, x) / math.sqrt(E)
    p = jax.nn.softmax(scores, axis=-1)
    attn_out = jnp.einsum("bqk,bke->bqe", p, x)
    return attn_out @ w_out.T + b_out


if __name__ == "__main__":
    # Small shapes consistent with the module: (batch, seq, embed_dim), attn_dim=2.
    B, S, E, A = 2, 8, 32, 2

    key = jax.random.PRNGKey(0)
    kx, kw, kb = jax.random.split(key, 3)

    x = jax.random.normal(kx, (B, S, E), dtype=jnp.float32)
    # Deterministic Linear(E -> A) params (torch layout: weight (A, E), bias (A,)).
    bound = 1.0 / math.sqrt(E)
    w_out = jax.random.uniform(kw, (A, E), minval=-bound, maxval=bound, dtype=jnp.float32)
    b_out = jax.random.uniform(kb, (A,), minval=-bound, maxval=bound, dtype=jnp.float32)

    forward = make_router_pf_self_attention(w_out, b_out)
    out = jax.block_until_ready(forward(x))
    ref = _reference(x, w_out, b_out)

    assert out.shape == (B, S, A)
    # bf16 MXU operands (f32 accumulation) vs the exact f32 reference -> relaxed tolerance.
    max_err = float(jnp.max(jnp.abs(out - ref)))
    assert jnp.allclose(out, ref, atol=5e-2, rtol=5e-2), (
        f"mismatch vs reference (max abs err {max_err})")
    print("KERNEL_OK")
</pallas_src>

<mosaic_0001>
module attributes {stable_mosaic.version = 11 : i64} {
  func.func @_attn_kernel(%arg0: i32, %arg1: memref<2x8x32xf32, #tpu.memory_space<vmem>>, %arg2: memref<32x128xf32, #tpu.memory_space<vmem>>, %arg3: memref<1x128xf32, #tpu.memory_space<vmem>>, %arg4: memref<2x8x2xf32, #tpu.memory_space<vmem>>) attributes {dimension_semantics = [#tpu.dimension_semantics<parallel>], iteration_bounds = array<i64: 1>, scalar_prefetch = 0 : i64, scratch_operands = 0 : i64, tpu.core_type = #tpu.core_type<tc>, window_params = [{transform_indices = @transform_0, window_bounds = array<i64: 2, 8, 32>}, {pipeline_mode = #tpu.pipeline_mode<synchronous>, transform_indices = @transform_1, window_bounds = array<i64: 32, 128>}, {pipeline_mode = #tpu.pipeline_mode<synchronous>, transform_indices = @transform_2, window_bounds = array<i64: 1, 128>}, {transform_indices = @transform_3, window_bounds = array<i64: 2, 8, 2>}]} {
    %c0 = arith.constant 0 : index
    %c0_0 = arith.constant 0 : index
    %c0_1 = arith.constant 0 : index
    %0 = vector.load %arg1[%c0, %c0_0, %c0_1] : memref<2x8x32xf32, #tpu.memory_space<vmem>>, vector<2x8x32xf32>
    %cst = arith.constant 0.176776692 : f32
    %1 = vector.broadcast %cst : f32 to vector<2x8x32xf32>
    %2 = arith.mulf %0, %1 : vector<2x8x32xf32>
    %3 = arith.truncf %2 : vector<2x8x32xf32> to vector<2x8x32xbf16>
    %4 = arith.truncf %0 : vector<2x8x32xf32> to vector<2x8x32xbf16>
    %cst_2 = arith.constant dense<0.000000e+00> : vector<2x8x8xf32>
    %5 = tpu.matmul %3, %4, %cst_2 {dimension_numbers = #tpu.dot_dimension_numbers<[2], [2], [1], [1], [0, 0, 0, 1, 1, 1], [0], [0]>} : vector<2x8x32xbf16>, vector<2x8x32xbf16>, vector<2x8x8xf32> -> vector<2x8x8xf32>
    %cst_3 = arith.constant dense<0xFF800000> : vector<2x8xf32>
    %6 = vector.multi_reduction <maximumf>, %5, %cst_3 [2] : vector<2x8x8xf32> to vector<2x8xf32>
    %7 = vector.shape_cast %6 : vector<2x8xf32> to vector<2x8x1xf32>
    %8 = vector.broadcast %7 : vector<2x8x1xf32> to vector<2x8x8xf32>
    %9 = arith.subf %5, %8 : vector<2x8x8xf32>
    %10 = math.exp %9 : vector<2x8x8xf32>
    %cst_4 = arith.constant dense<0.000000e+00> : vector<2x8xf32>
    %11 = vector.multi_reduction <add>, %10, %cst_4 [2] : vector<2x8x8xf32> to vector<2x8xf32>
    %12 = vector.shape_cast %11 : vector<2x8xf32> to vector<2x8x1xf32>
    %13 = vector.shape_cast %4 : vector<2x8x32xbf16> to vector<16x32xbf16>
    %c0_5 = arith.constant 0 : index
    %c0_6 = arith.constant 0 : index
    %14 = vector.load %arg2[%c0_5, %c0_6] : memref<32x128xf32, #tpu.memory_space<vmem>>, vector<32x128xf32>
    %15 = arith.truncf %14 : vector<32x128xf32> to vector<32x128xbf16>
    %cst_7 = arith.constant dense<0.000000e+00> : vector<16x128xf32>
    %16 = tpu.matmul %13, %15, %cst_7 {dimension_numbers = #tpu.dot_dimension_numbers<[1], [0], [0], [1], [0, 0, 1, 1], [], []>} : vector<16x32xbf16>, vector<32x128xbf16>, vector<16x128xf32> -> vector<16x128xf32>
    %17 = vector.shape_cast %16 : vector<16x128xf32> to vector<2x8x128xf32>
    %18 = arith.truncf %17 : vector<2x8x128xf32> to vector<2x8x128xbf16>
    %19 = arith.truncf %10 : vector<2x8x8xf32> to vector<2x8x8xbf16>
    %cst_8 = arith.constant dense<0.000000e+00> : vector<2x8x128xf32>
    %20 = tpu.matmul %19, %18, %cst_8 {dimension_numbers = #tpu.dot_dimension_numbers<[2], [1], [1], [2], [0, 0, 0, 1, 1, 2], [0], [0]>} : vector<2x8x8xbf16>, vector<2x8x128xbf16>, vector<2x8x128xf32> -> vector<2x8x128xf32>
    %cst_9 = arith.constant 1.000000e+00 : f32
    %21 = vector.broadcast %cst_9 : f32 to vector<2x8x1xf32>
    %22 = arith.divf %21, %12 : vector<2x8x1xf32>
    %23 = vector.broadcast %22 : vector<2x8x1xf32> to vector<2x8x128xf32>
    %24 = arith.mulf %20, %23 : vector<2x8x128xf32>
    %c0_10 = arith.constant 0 : index
    %c0_11 = arith.constant 0 : index
    %25 = vector.load %arg3[%c0_10, %c0_11] : memref<1x128xf32, #tpu.memory_space<vmem>>, vector<1x128xf32>
    %26 = vector.shape_cast %25 : vector<1x128xf32> to vector<1x1x128xf32>
    %27 = vector.broadcast %26 : vector<1x1x128xf32> to vector<2x8x128xf32>
    %28 = arith.addf %24, %27 : vector<2x8x128xf32>
    %29 = vector.extract_strided_slice %28 {offsets = [0, 0, 0], sizes = [2, 8, 2], strides = [1, 1, 1]} : vector<2x8x128xf32> to vector<2x8x2xf32>
    %c0_12 = arith.constant 0 : index
    %c0_13 = arith.constant 0 : index
    %c0_14 = arith.constant 0 : index
    %30 = vector.load %arg4[%c0_12, %c0_13, %c0_14] : memref<2x8x2xf32, #tpu.memory_space<vmem>>, vector<2x8x2xf32>
    tpu.vector_store %arg4[%c0_12, %c0_13, %c0_14], %29 {strides = array<i32>} : memref<2x8x2xf32, #tpu.memory_space<vmem>>, vector<2x8x2xf32>,
    return
  }
  func.func @transform_0(%arg0: i32) -> (i32, i32, i32) {
    %c0_i32 = arith.constant 0 : i32
    %c0_i32_0 = arith.constant 0 : i32
    %c0_i32_1 = arith.constant 0 : i32
    return %arg0, %c0_i32, %c0_i32_0 : i32, i32, i32
  }
  func.func @transform_1(%arg0: i32) -> (i32, i32) {
    %c0_i32 = arith.constant 0 : i32
    %c0_i32_0 = arith.constant 0 : i32
    %c0_i32_1 = arith.constant 0 : i32
    return %c0_i32, %c0_i32_0 : i32, i32
  }
  func.func @transform_2(%arg0: i32) -> (i32, i32) {
    %c0_i32 = arith.constant 0 : i32
    %c0_i32_0 = arith.constant 0 : i32
    %c0_i32_1 = arith.constant 0 : i32
    return %c0_i32, %c0_i32_0 : i32, i32
  }
  func.func @transform_3(%arg0: i32) -> (i32, i32, i32) {
    %c0_i32 = arith.constant 0 : i32
    %c0_i32_0 = arith.constant 0 : i32
    %c0_i32_1 = arith.constant 0 : i32
    return %arg0, %c0_i32, %c0_i32_0 : i32, i32, i32
  }
}

</mosaic_0001>

<llo_original>
// kernel: tpu_custom_call.1
$region0: #{tpu_custom_call.1}
  #allocation0 [shape = 'u32[]', space=smem, size = 0x4, offset = 0x4, fixed_abs, tag = 'smem constant byte address 0x4 - core index']
  #allocation1 [shape = 'u32[72,128]{1,0:T(1,128)}', space=vmem, size = 0x9000, scoped, tag = 'internal scratch']
  %s0 = inlined_call_operand.hbm [shape: f32[2,8,32], index: 0, kind: input, shape index: {}]
  %s1 = inlined_call_operand.hbm [shape: f32[32,128], index: 1, kind: input, shape index: {}]
  %s2 = inlined_call_operand.vmem [shape: f32[1,128], index: 2, kind: input, shape index: {}]
  %s3 = inlined_call_operand.vmem [shape: f32[2,8,2], index: 3, kind: output, shape index: {}]
  %s4 = sld [smem:[#allocation0]]
  $region30: #{tpu_custom_call.1} parent=0
    _
  %s6 = ssub.s32 1, %s4
  %s7 = scalar_select 0, %s6, %s4
  $region1: #{tpu_custom_call.1} parent=0
    #allocation2 [shape = 'u8[8192]{0}', space=vmem, size = 0x2000, scoped, tag = 'input window, operand 0, single buffered']
    #allocation3 [shape = 's32[1]{0}', space=sflag, size = 0x4, scoped, tag = 'scoped memory for tpu_custom_call.1']
    #allocation4 [shape = 'u8[16384]{0}', space=vmem, size = 0x4000, scoped, tag = 'input window, operand 1, single buffered']
    #allocation5 [shape = 's32[1]{0}', space=sflag, size = 0x4, scoped, tag = 'scoped memory for tpu_custom_call.1']
    %8 = vsyncpa [#allocation3], 0
    %9 = vsyncpa [#allocation5], 0
    // Predicated region
    $region2: #{tpu_custom_call.1} parent=1 // pred_check
      _
    $region3: #{tpu_custom_call.1} parent=1 // pred_check_branch
      %11 = sbr.rel (0) target = $region5
    $region4: #{tpu_custom_call.1} parent=1 // pred_region
      %13 = vsyncadd [#allocation3], 0
      %s14 = sshll.u32 %s0, 4
      %s15 = int_to_ptr.hbm [resolvable:$true] %s14
      %s16 = sshll.u32 [#allocation2], 4
      %s17 = int_to_ptr.vmem [resolvable:$true] %s16
      %22 = dma.hbm_to_vmem [thread:$0]  %s15, 256, %s17, [#allocation3], 128, 128, 8
    $region5: #{tpu_custom_call.1} parent=1 // pred_fallthru
      _
    // Predicated region
    $region6: #{tpu_custom_call.1} parent=1 // pred_check
      _
    $region7: #{tpu_custom_call.1} parent=1 // pred_check_branch
      %24 = sbr.rel (0) target = $region9
    $region8: #{tpu_custom_call.1} parent=1 // pred_region
      %26 = vsyncadd [#allocation5], 0
      %s27 = sshll.u32 %s1, 4
      %s28 = int_to_ptr.hbm [resolvable:$true] %s27
      %s29 = sshll.u32 [#allocation4], 4
      %s30 = int_to_ptr.vmem [resolvable:$true] %s29
      %35 = dma.hbm_to_vmem [thread:$0]  %s28, 512, %s30, [#allocation5], 128, 128, 8
    $region9: #{tpu_custom_call.1} parent=1 // pred_fallthru
      _
    // Predicated region
    $region10: #{tpu_custom_call.1} parent=1 // pred_check
      _
    $region11: #{tpu_custom_call.1} parent=1 // pred_check_branch
      %37 = sbr.rel (0) target = $region13
    $region12: #{tpu_custom_call.1} parent=1 // pred_region
      _
    $region13: #{tpu_custom_call.1} parent=1 // pred_fallthru
      _
    // Predicated region
    $region14: #{tpu_custom_call.1} parent=1 // pred_check
      _
    $region15: #{tpu_custom_call.1} parent=1 // pred_check_branch
      %39 = sbr.rel (0) target = $region17
    $region16: #{tpu_custom_call.1} parent=1 // pred_region
      %41 = dma.done [#allocation3], 256
    $region17: #{tpu_custom_call.1} parent=1 // pred_fallthru
      _
    // Predicated region
    $region18: #{tpu_custom_call.1} parent=1 // pred_check
      _
    $region19: #{tpu_custom_call.1} parent=1 // pred_check_branch
      %43 = sbr.rel (0) target = $region21
    $region20: #{tpu_custom_call.1} parent=1 // pred_region
      %45 = dma.done [#allocation5], 512
    $region21: #{tpu_custom_call.1} parent=1 // pred_fallthru
      _
    %v47 = vld [vmem:[#allocation2] sm:$0xff]
    %v48 = vld [vmem:[#allocation2 + $0x8] sm:$0xff]
    %v49 = vmul.f32 %v47, 0.17677669
    %v50 = vmul.f32 %v48, 0.17677669
    %v51 = vpack.c.bf16 %v49, %v49
    %v52 = vpack.c.bf16 %v50, %v50
    %v53 = vpack.c.bf16 %v47, %v47
    %v54 = vpack.c.bf16 %v48, %v48
    %vm55 = vcmask 261120
    %v57 = vsel %vm55, %v51, 0
    %v60 = vsel %vm55, %v53, 0
    %62 = vmatpush.bf16.xpose.msra.mxu0 0
    %63 = vmatpush.bf16.xpose.msra.mxu0 0
    %64 = vmatpush.bf16.xpose.msra.mxu0 0
    %65 = vmatpush.bf16.xpose.msra.mxu0 0
    %66 = vmatpush.bf16.xpose.msra.mxu0 0
    %67 = vmatpush.bf16.xpose.msra.mxu0 0
    %68 = vmatpush.bf16.xpose.msra.mxu0 0
    %69 = vmatpush.bf16.xpose.msra.mxu0 %v60
    %70 = vmatmul.bf16.gmra.mxu0 %v57
    %v71 = vpop.f32.mrf.mxu0
    %v72 = vadd.f32 0.0, %v71
    %v73 = vpop.f32.mrf.mxu0
    %74 = vdwg.mxu0
    %v76 = vsel %vm55, %v52, 0
    %v79 = vsel %vm55, %v54, 0
    %81 = vmatpush.bf16.xpose.msra.mxu0 0
    %82 = vmatpush.bf16.xpose.msra.mxu0 0
    %83 = vmatpush.bf16.xpose.msra.mxu0 0
    %84 = vmatpush.bf16.xpose.msra.mxu0 0
    %85 = vmatpush.bf16.xpose.msra.mxu0 0
    %86 = vmatpush.bf16.xpose.msra.mxu0 0
    %87 = vmatpush.bf16.xpose.msra.mxu0 0
    %88 = vmatpush.bf16.xpose.msra.mxu0 %v79
    %89 = vmatmul.bf16.gmra.mxu0 %v76
    %v90 = vpop.f32.mrf.mxu0
    %v91 = vadd.f32 0.0, %v90
    %v92 = vpop.f32.mrf.mxu0
    %93 = vdwg.mxu0
    %vm94 = vcmask 64512
    %v95 = vsel %vm94, %v72, -inf
    %96 = vmax.xlane.f32.xlu0 %v95
    %v97 = vpop.xlane.xlu0 %96
    %v98 = vsel %vm94, %v91, -inf
    %99 = vmax.xlane.f32.xlu0 %v98
    %v100 = vpop.xlane.xlu0 %99
    %v101 = vsub.f32 %v72, %v97
    %v102 = vsub.f32 %v91, %v100
    %v103 = vmul.f32 %v101, 1.442695
    %v104 = vpow.pop %v103
    %v105 = vmul.f32 %v102, 1.442695
    %v106 = vpow.pop %v105
    %v107 = vsel %vm94, %v104, 0.0
    %108 = vadd.xlane.f32.xlu0 %v107
    %v109 = vpop.xlane.xlu0 %108
    %v110 = vsel %vm94, %v106, 0.0
    %111 = vadd.xlane.f32.xlu0 %v110
    %v112 = vpop.xlane.xlu0 %111
    %v113 = vld [vmem:[#allocation4] sm:$0xff]
    %v114 = vld [vmem:[#allocation4 + $0x8] sm:$0xff]
    %v115 = vld [vmem:[#allocation4 + $0x10] sm:$0xff]
    %v116 = vld [vmem:[#allocation4 + $0x18] sm:$0xff]
    %v117 = vpack.c.bf16 %v114, %v113
    %v118 = vpack.c.bf16 %v116, %v115
    %v121 = vunpack.c.l.b16 %v53
    %v122 = vunpack.c.l.b16 %v54
    %v123 = vpack.c.b16 %v122, %v121
    %v125 = vsel %vm55, %v123, 0
    %127 = vmatpush.bf16.msra.mxu0 0
    %128 = vmatpush.bf16.msra.mxu0 0
    %129 = vmatpush.bf16.msra.mxu0 0
    %130 = vmatpush.bf16.msra.mxu0 0
    %131 = vmatpush.bf16.msra.mxu0 0
    %132 = vmatpush.bf16.msra.mxu0 0
    %133 = vmatpush.bf16.msra.mxu0 %v118
    %134 = vmatpush.bf16.msra.mxu0 %v117
    %135 = vmatmul.bf16.gmra.mxu0 %v125
    %v136 = vpop.f32.mrf.mxu0
    %v137 = vadd.f32 0.0, %v136
    %v138 = vpop.f32.mrf.mxu0
    %v139 = vadd.f32 0.0, %v138
    %140 = vdwg.mxu0
    %v141 = vpack.c.bf16 %v137, %v137
    %v142 = vpack.c.bf16 %v139, %v139
    %v143 = vpack.c.bf16 %v104, %v104
    %v144 = vpack.c.bf16 %v106, %v106
    %v146 = vsel %vm94, %v143, 0
    %vm148 = vcmask 1043456
    %v150 = vsel %vm148, %v141, 0
    %152 = vmatpush.bf16.msra.mxu0 0
    %153 = vmatpush.bf16.msra.mxu0 0
    %154 = vmatpush.bf16.msra.mxu0 0
    %155 = vmatpush.bf16.msra.mxu0 0
    %156 = vmatpush.bf16.msra.mxu0 0
    %157 = vmatpush.bf16.msra.mxu0 0
    %158 = vmatpush.bf16.msra.mxu0 0
    %159 = vmatpush.bf16.msra.mxu0 %v150
    %160 = vmatmul.bf16.gmra.mxu0 %v146
    %v161 = vpop.f32.mrf.mxu0
    %v162 = vadd.f32 0.0, %v161
    %v163 = vpop.f32.mrf.mxu0
    %164 = vdwg.mxu0
    %v166 = vsel %vm94, %v144, 0
    %v169 = vsel %vm148, %v142, 0
    %171 = vmatpush.bf16.msra.mxu0 0
    %172 = vmatpush.bf16.msra.mxu0 0
    %173 = vmatpush.bf16.msra.mxu0 0
    %174 = vmatpush.bf16.msra.mxu0 0
    %175 = vmatpush.bf16.msra.mxu0 0
    %176 = vmatpush.bf16.msra.mxu0 0
    %177 = vmatpush.bf16.msra.mxu0 0
    %178 = vmatpush.bf16.msra.mxu0 %v169
    %179 = vmatmul.bf16.gmra.mxu0 %v166
    %v180 = vpop.f32.mrf.mxu0
    %v181 = vadd.f32 0.0, %v180
    %v182 = vpop.f32.mrf.mxu0
    %183 = vdwg.mxu0
    %v184 = vrcp.pop %v109
    %v185 = vmul.f32 %v109, %v184
    %v186 = vsub.f32 1.0, %v185
    %v187 = vmul.f32 %v184, %v186
    %v188 = vadd.f32 %v184, %v187
    %vm189 = vweird.f32 %v109
    %vm190 = vweird.f32 %v184
    %vm191 = vmor %vm189, %vm190
    %v192 = vsel %vm191, %v184, %v188
    %v193 = vand.u32 2147483647, %v109
    %vm194 = vcmp.eq.f32.partialorder %v193, 8.507059e+37
    %v195 = vand.u32 %v109, 2147483648
    %v196 = vor.u32 1.1754944e-38, %v195
    %v197 = vsel %vm194, %v196, %v192
    %v198 = vmul.f32 1.0, %v197
    %v199 = vrcp.pop %v112
    %v200 = vmul.f32 %v112, %v199
    %v201 = vsub.f32 1.0, %v200
    %v202 = vmul.f32 %v199, %v201
    %v203 = vadd.f32 %v199, %v202
    %vm204 = vweird.f32 %v112
    %vm205 = vweird.f32 %v199
    %vm206 = vmor %vm204, %vm205
    %v207 = vsel %vm206, %v199, %v203
    %v208 = vand.u32 2147483647, %v112
    %vm209 = vcmp.eq.f32.partialorder %v208, 8.507059e+37
    %v210 = vand.u32 %v112, 2147483648
    %v211 = vor.u32 1.1754944e-38, %v210
    %v212 = vsel %vm209, %v211, %v207
    %v213 = vmul.f32 1.0, %v212
    %v214 = vmul.f32 %v162, %v198
    %v215 = vmul.f32 %v181, %v213
    %v216 = vld [vmem:[%s2] sm:$0x1]
    %v218 = vperm.slane %v216, 0
    %v220 = vadd.f32 %v214, %v218
    %v221 = vadd.f32 %v215, %v218
    %vm222 = vcmask 15360
    %223 = vst.msk [vmem:[%s3] sm:$0xff] %vm222, %v220
    %224 = vst.msk [vmem:[%s3 + $0x8] sm:$0xff] %vm222, %v221
    // Predicated region
    $region22: #{tpu_custom_call.1} parent=1 // pred_check
      _
    $region23: #{tpu_custom_call.1} parent=1 // pred_check_branch
      %226 = sbr.rel (0) target = $region25
    $region24: #{tpu_custom_call.1} parent=1 // pred_region
      _
    $region25: #{tpu_custom_call.1} parent=1 // pred_fallthru
      _
    // Predicated region
    $region26: #{tpu_custom_call.1} parent=1 // pred_check
      _
    $region27: #{tpu_custom_call.1} parent=1 // pred_check_branch
      %228 = sbr.rel (0) target = $region29
    $region28: #{tpu_custom_call.1} parent=1 // pred_region
      _
    $region29: #{tpu_custom_call.1} parent=1 // pred_fallthru
      _
    %229 = vsyncpa [#allocation3], 1
    %230 = vsyncpa [#allocation5], 1

</llo_original>
